<compile_context>
chip_gen: v7x
topology: tpu7x:2x2x1
jax: 0.10.0
libtpu: 0.0.40
codegen_flags: <defaults>
</compile_context>

<pallas_src>
import functools

import jax
import jax.numpy as jnp
from jax import lax
from jax.experimental import pallas as pl
from jax.experimental.pallas import tpu as pltpu


def _round_down(x, m):
    return (x // m) * m


def _round_up(x, m):
    return ((x + m - 1) // m) * m


def _color_consistency_kernel(gen_ref, tgt_ref, out_ref, dsum_ref, *,
                              inv_hw, hw, tile, chunk, n_hw_inner,
                              first_masked, needs_mask):
    p = pl.program_id(0)
    j = pl.program_id(2)
    g_idx = p * n_hw_inner + j            # global spatial-tile index
    block_r = dsum_ref.shape[0]
    n_chunks = tile // chunk

    @pl.when(j == 0)
    def _():
        dsum_ref[...] = jnp.zeros_like(dsum_ref)

    def tile_sum(masked):
        # Strip-mined lane reduction: bounds the in-kernel f32 working set to a
        # handful of vregs regardless of the (multi-MiB) BlockSpec tile size.
        def body(k, carry):
            off = pl.multiple_of(k * chunk, chunk)
            g = gen_ref[:, pl.ds(off, chunk)].astype(jnp.float32)
            t = tgt_ref[:, pl.ds(off, chunk)].astype(jnp.float32)
            d = g - t
            if masked:
                idx = lax.broadcasted_iota(jnp.int32, d.shape, 1)
                idx = idx + (g_idx * tile + off)
                d = jnp.where(idx < hw, d, 0.0)
            return carry + jnp.sum(d, axis=-1, keepdims=True)

        return lax.fori_loop(0, n_chunks, body,
                             jnp.zeros((block_r, 1), jnp.float32))

    if needs_mask:
        # Only the last real spatial tile (and clamped overshoot tiles) can
        # contain out-of-bounds lanes; all earlier tiles skip the mask entirely.
        @pl.when(g_idx < first_masked)
        def _():
            dsum_ref[...] += tile_sum(False)

        @pl.when(g_idx >= first_masked)
        def _():
            dsum_ref[...] += tile_sum(True)
    else:
        dsum_ref[...] += tile_sum(False)

    @pl.when(j == n_hw_inner - 1)
    def _():
        out_ref[...] = (dsum_ref[...] * inv_hw).reshape(out_ref.shape)


_ROW_BLOCK_CAP = 256          # rows packed per block (sublane axis), mult of 8
_CHUNK_TARGET_ELEMS = 16384   # per-operand strip-mine chunk (~16 f32 vregs)


def _vmem_budgets():
    """Returns (per-input tile byte budget, vmem_limit_bytes), generation-aware."""
    vmem_cap = 64 * 1024 * 1024            # conservative default: v7x per-TC VMEM
    try:
        vmem_cap = int(pltpu.get_tpu_info().vmem_capacity_bytes)
    except Exception:
        pass
    if vmem_cap >= 100 * 1024 * 1024:      # v5e / v6e: 128 MiB physical VMEM
        return 12 * 1024 * 1024, 80 * 1024 * 1024
    return 8 * 1024 * 1024, 48 * 1024 * 1024   # v7x: 64 MiB physical VMEM


def color_consistency_loss(generated, target, *, max_tile_bytes=None,
                           vmem_limit_bytes=None):
    assert generated.shape == target.shape, (generated.shape, target.shape)
    N, C, H, W = generated.shape
    HW = H * W
    rows = N * C

    # Free layout plumbing (NCHW is contiguous): pack (N, C) onto the sublane
    # axis and the spatial extent onto the lane axis.
    gen = generated.reshape(rows, HW)
    tgt = target.reshape(rows, HW)

    default_tile_bytes, default_vmem_limit = _vmem_budgets()
    max_tile_bytes = default_tile_bytes if max_tile_bytes is None else max_tile_bytes
    vmem_limit = default_vmem_limit if vmem_limit_bytes is None else vmem_limit_bytes

    itemsize = max(jnp.dtype(generated.dtype).itemsize,
                   jnp.dtype(target.dtype).itemsize)

    # Row (sublane) blocking.
    if rows <= _ROW_BLOCK_CAP:
        block_r, n_rb = rows, 1                    # full extent: always legal
    else:
        block_r = _ROW_BLOCK_CAP                   # multiple of 8
        n_rb = pl.cdiv(rows, block_r)              # ragged last block is fine
    r_pad = max(_round_up(block_r, 8), 8)

    # Lane (spatial) blocking: the tile is a multiple of the strip-mine chunk
    # and sized by the actual input itemsize against the per-generation budget.
    chunk = max(128, _round_down(_CHUNK_TARGET_ELEMS // r_pad, 128))
    chunk = min(chunk, _round_up(HW, 128))
    cap_lanes = max(chunk,
                    _round_down(max_tile_bytes // (r_pad * itemsize), chunk))
    tile = min(cap_lanes, _round_up(HW, chunk))
    n_hw = pl.cdiv(HW, tile)

    ragged = (HW % tile) != 0
    first_masked = (n_hw - 1) if ragged else n_hw

    # v7x has 2 TensorCores: guarantee >= 2 blocks on the parallel portion of
    # the grid by splitting the spatial reduction into 2 partial sums whenever
    # the row axis alone cannot feed both cores.
    n_par = 2 if (n_rb == 1 and n_hw >= 2) else 1
    n_hw_inner = pl.cdiv(n_hw, n_par)
    overshoot = n_par * n_hw_inner > n_hw
    needs_mask = first_masked <= n_par * n_hw_inner - 1

    if overshoot:
        def spatial_block(pi, ji):
            return jnp.minimum(pi * n_hw_inner + ji, n_hw - 1)
    else:
        def spatial_block(pi, ji):
            return pi * n_hw_inner + ji

    kernel = functools.partial(
        _color_consistency_kernel,
        inv_hw=1.0 / float(HW), hw=HW, tile=tile, chunk=chunk,
        n_hw_inner=n_hw_inner, first_masked=first_masked,
        needs_mask=needs_mask)

    cost = pl.CostEstimate(
        flops=2 * rows * HW,
        transcendentals=0,
        bytes_accessed=2 * rows * HW * itemsize + n_par * rows * 4)

    # Per-row (= per (n, c)) spatial-mean differences, one partial per parallel
    # chunk, pre-scaled by 1/HW inside the kernel.
    partial = pl.pallas_call(
        kernel,
        out_shape=jax.ShapeDtypeStruct((n_par, rows, 1), jnp.float32),
        grid=(n_par, n_rb, n_hw_inner),
        in_specs=[
            pl.BlockSpec((block_r, tile),
                         lambda p, r, j: (r, spatial_block(p, j))),
            pl.BlockSpec((block_r, tile),
                         lambda p, r, j: (r, spatial_block(p, j))),
        ],
        out_specs=pl.BlockSpec((1, block_r, 1), lambda p, r, j: (p, r, 0)),
        scratch_shapes=[pltpu.VMEM((block_r, 1), jnp.float32)],
        compiler_params=pltpu.CompilerParams(
            dimension_semantics=("parallel", "parallel", "arbitrary"),
            vmem_limit_bytes=vmem_limit),
        cost_estimate=cost,
    )(gen, tgt)

    # Tiny O(N*C) finalize in plain JAX: combine per-core spatial partials,
    # then the L1 reduction over (N, C).
    mean_diff = jnp.sum(partial[:, :, 0], axis=0).reshape(N, C)
    return jnp.mean(jnp.abs(mean_diff))


def _reference(generated, target):
    g = jnp.mean(generated.astype(jnp.float32), axis=(2, 3))
    t = jnp.mean(target.astype(jnp.float32), axis=(2, 3))
    return jnp.mean(jnp.abs(g - t))


if __name__ == "__main__":
    key = jax.random.PRNGKey(0)

    # Primary small case from the module spec.
    k1, k2, key = jax.random.split(key, 3)
    N, C, H, W = 2, 4, 16, 16
    generated = jax.random.normal(k1, (N, C, H, W), dtype=jnp.float32)
    target = jax.random.normal(k2, (N, C, H, W), dtype=jnp.float32)
    loss = jax.block_until_ready(color_consistency_loss(generated, target))
    ref = _reference(generated, target)
    assert jnp.allclose(loss, ref, atol=1e-6, rtol=1e-5), (loss, ref)

    # Ragged spatial extent (exercises the masked last-tile path).
    k1, k2, key = jax.random.split(key, 3)
    g2 = jax.random.normal(k1, (2, 3, 5, 5), dtype=jnp.float32)
    t2 = jax.random.normal(k2, (2, 3, 5, 5), dtype=jnp.float32)
    loss2 = jax.block_until_ready(color_consistency_loss(g2, t2))
    assert jnp.allclose(loss2, _reference(g2, t2), atol=1e-6, rtol=1e-5)

    # Small-budget run: multi-tile accumulation, 2-way parallel spatial split,
    # overshoot clamping and the masked path, all at a tiny shape.
    k1, k2, key = jax.random.split(key, 3)
    g3 = jax.random.normal(k1, (2, 4, 96, 96), dtype=jnp.float32)
    t3 = jax.random.normal(k2, (2, 4, 96, 96), dtype=jnp.float32)
    loss3 = jax.block_until_ready(
        color_consistency_loss(g3, t3, max_tile_bytes=64 * 1024))
    assert jnp.allclose(loss3, _reference(g3, t3), atol=1e-6, rtol=1e-5)

    print("KERNEL_OK")
</pallas_src>

<mosaic_0001>
module attributes {stable_mosaic.version = 11 : i64} {
  func.func @_color_consistency_kernel(%arg0: i32, %arg1: i32, %arg2: i32, %arg3: memref<8x256xf32, #tpu.memory_space<vmem>>, %arg4: memref<8x256xf32, #tpu.memory_space<vmem>>, %arg5: memref<1x8x1xf32, #tpu.memory_space<vmem>>, %arg6: memref<8x1xf32, #tpu.memory_space<vmem>>) attributes {dimension_semantics = [#tpu.dimension_semantics<parallel>, #tpu.dimension_semantics<parallel>, #tpu.dimension_semantics<arbitrary>], iteration_bounds = array<i64: 1, 1, 1>, scalar_prefetch = 0 : i64, scratch_operands = 1 : i64, tpu.core_type = #tpu.core_type<tc>, window_params = [{transform_indices = @transform_0, window_bounds = array<i64: 8, 256>}, {transform_indices = @transform_1, window_bounds = array<i64: 8, 256>}, {transform_indices = @transform_2, window_bounds = array<i64: 1, 8, 1>}]} {
    %c0_i32 = arith.constant 0 : i32
    %0 = arith.cmpi eq, %arg2, %c0_i32 : i32
    %1 = arith.extui %0 : i1 to i32
    %c0_i32_0 = arith.constant 0 : i32
    %2 = arith.cmpi ne, %1, %c0_i32_0 : i32
    scf.if %2 {
      %cst_10 = arith.constant 0.000000e+00 : f32
      %20 = vector.broadcast %cst_10 : f32 to vector<8x1xf32>
      %c0_11 = arith.constant 0 : index
      %c0_12 = arith.constant 0 : index
      %21 = vector.load %arg6[%c0_11, %c0_12] : memref<8x1xf32, #tpu.memory_space<vmem>>, vector<8x1xf32>
      tpu.vector_store %arg6[%c0_11, %c0_12], %20 {strides = array<i32>} : memref<8x1xf32, #tpu.memory_space<vmem>>, vector<8x1xf32>,
    } else {
    }
    %c0 = arith.constant 0 : index
    %c0_1 = arith.constant 0 : index
    %3 = vector.load %arg6[%c0, %c0_1] : memref<8x1xf32, #tpu.memory_space<vmem>>, vector<8x1xf32>
    %cst = arith.constant 0.000000e+00 : f32
    %4 = vector.broadcast %cst : f32 to vector<8x1xf32>
    %c0_i32_2 = arith.constant 0 : i32
    %c256_i32 = arith.constant 256 : i32
    %5 = arith.muli %c0_i32_2, %c256_i32 : i32
    %6 = tpu.assume_multiple %5, 256 : i32
    %c0_3 = arith.constant 0 : index
    %7 = arith.index_cast %6 : i32 to index
    %8 = vector.load %arg3[%c0_3, %7] : memref<8x256xf32, #tpu.memory_space<vmem>>, vector<8x256xf32>
    %c0_4 = arith.constant 0 : index
    %9 = arith.index_cast %6 : i32 to index
    %10 = vector.load %arg4[%c0_4, %9] : memref<8x256xf32, #tpu.memory_space<vmem>>, vector<8x256xf32>
    %11 = arith.subf %8, %10 : vector<8x256xf32>
    %cst_5 = arith.constant dense<0.000000e+00> : vector<8xf32>
    %12 = vector.multi_reduction <add>, %11, %cst_5 [1] : vector<8x256xf32> to vector<8xf32>
    %13 = vector.shape_cast %12 : vector<8xf32> to vector<8x1xf32>
    %14 = arith.addf %4, %13 : vector<8x1xf32>
    %c1_i32 = arith.constant 1 : i32
    %15 = arith.addf %3, %14 : vector<8x1xf32>
    %c0_6 = arith.constant 0 : index
    %c0_7 = arith.constant 0 : index
    %16 = vector.load %arg6[%c0_6, %c0_7] : memref<8x1xf32, #tpu.memory_space<vmem>>, vector<8x1xf32>
    tpu.vector_store %arg6[%c0_6, %c0_7], %15 {strides = array<i32>} : memref<8x1xf32, #tpu.memory_space<vmem>>, vector<8x1xf32>,
    %c0_i32_8 = arith.constant 0 : i32
    %17 = arith.cmpi eq, %arg2, %c0_i32_8 : i32
    %18 = arith.extui %17 : i1 to i32
    %c0_i32_9 = arith.constant 0 : i32
    %19 = arith.cmpi ne, %18, %c0_i32_9 : i32
    scf.if %19 {
      %c0_10 = arith.constant 0 : index
      %c0_11 = arith.constant 0 : index
      %20 = vector.load %arg6[%c0_10, %c0_11] : memref<8x1xf32, #tpu.memory_space<vmem>>, vector<8x1xf32>
      %cst_12 = arith.constant 3.906250e-03 : f32
      %21 = vector.broadcast %cst_12 : f32 to vector<8x1xf32>
      %22 = arith.mulf %20, %21 : vector<8x1xf32>
      %23 = vector.shape_cast %22 : vector<8x1xf32> to vector<1x8x1xf32>
      %c0_13 = arith.constant 0 : index
      %c0_14 = arith.constant 0 : index
      %c0_15 = arith.constant 0 : index
      %24 = vector.load %arg5[%c0_13, %c0_14, %c0_15] : memref<1x8x1xf32, #tpu.memory_space<vmem>>, vector<1x8x1xf32>
      tpu.vector_store %arg5[%c0_13, %c0_14, %c0_15], %23 {strides = array<i32>} : memref<1x8x1xf32, #tpu.memory_space<vmem>>, vector<1x8x1xf32>,
    } else {
    }
    return
  }
  func.func @transform_0(%arg0: i32, %arg1: i32, %arg2: i32) -> (i32, i32) {
    %c1_i32 = arith.constant 1 : i32
    %0 = arith.muli %arg0, %c1_i32 : i32
    %1 = arith.addi %0, %arg2 : i32
    %c0_i32 = arith.constant 0 : i32
    return %arg1, %1 : i32, i32
  }
  func.func @transform_1(%arg0: i32, %arg1: i32, %arg2: i32) -> (i32, i32) {
    %c1_i32 = arith.constant 1 : i32
    %0 = arith.muli %arg0, %c1_i32 : i32
    %1 = arith.addi %0, %arg2 : i32
    %c0_i32 = arith.constant 0 : i32
    return %arg1, %1 : i32, i32
  }
  func.func @transform_2(%arg0: i32, %arg1: i32, %arg2: i32) -> (i32, i32, i32) {
    %c0_i32 = arith.constant 0 : i32
    %c0_i32_0 = arith.constant 0 : i32
    return %arg0, %arg1, %c0_i32 : i32, i32, i32
  }
}

</mosaic_0001>

<llo_original>
// kernel: tpu_custom_call.1
$region0: #{tpu_custom_call.1}
  #allocation0 [shape = 'u32[]', space=smem, size = 0x4, offset = 0x4, fixed_abs, tag = 'smem constant byte address 0x4 - core index']
  #allocation1 [shape = 'u32[144,128]{1,0:T(1,128)}', space=vmem, size = 0x12000, scoped, tag = 'internal scratch']
  #allocation2 [shape = 'f32[8,1]{1,0:T(8,128)}', space=vmem, size = 0x1000, scoped, tag = 'scratch operand']
  %s0 = inlined_call_operand.hbm [shape: f32[8,256], index: 0, kind: input, shape index: {}]
  %s1 = inlined_call_operand.hbm [shape: f32[8,256], index: 1, kind: input, shape index: {}]
  %s2 = inlined_call_operand.vmem [shape: f32[1,8,1], index: 2, kind: output, shape index: {}]
  %s3 = sld [smem:[#allocation0]]
  $region34: #{tpu_custom_call.1} parent=0
    _
  %s5 = ssub.s32 1, %s3
  %s6 = scalar_select 0, %s5, %s3
  $region1: #{tpu_custom_call.1} parent=0
    #allocation3 [shape = 'u8[8192]{0}', space=vmem, size = 0x2000, scoped, tag = 'input window, operand 0, single buffered']
    #allocation4 [shape = 's32[1]{0}', space=sflag, size = 0x4, scoped, tag = 'scoped memory for tpu_custom_call.1']
    #allocation5 [shape = 'u8[8192]{0}', space=vmem, size = 0x2000, scoped, tag = 'input window, operand 1, single buffered']
    #allocation6 [shape = 's32[1]{0}', space=sflag, size = 0x4, scoped, tag = 'scoped memory for tpu_custom_call.1']
    %7 = vsyncpa [#allocation4], 0
    %8 = vsyncpa [#allocation6], 0
    // Predicated region
    $region2: #{tpu_custom_call.1} parent=1 // pred_check
      _
    $region3: #{tpu_custom_call.1} parent=1 // pred_check_branch
      %10 = sbr.rel (0) target = $region5
    $region4: #{tpu_custom_call.1} parent=1 // pred_region
      %s11 = sadd.s32 0, 0
      %s12 = smul.u32 2, %s11
      %s14 = ssub.s32 256, 256
      %15 = vsyncadd [#allocation4], %s14
      %s16 = smul.addr %s12, 128
      %s17 = scalar_lea.hbm %s0, %s16
      %s19 = sshll.u32 [#allocation3], 4
      %s20 = int_to_ptr.vmem [resolvable:$true] %s19
      %22 = dma.hbm_to_vmem [thread:$0]  %s17, 256, %s20, [#allocation4]
    $region5: #{tpu_custom_call.1} parent=1 // pred_fallthru
      _
    // Predicated region
    $region6: #{tpu_custom_call.1} parent=1 // pred_check
      _
    $region7: #{tpu_custom_call.1} parent=1 // pred_check_branch
      %24 = sbr.rel (0) target = $region9
    $region8: #{tpu_custom_call.1} parent=1 // pred_region
      %s25 = sadd.s32 0, 0
      %s26 = smul.u32 2, %s25
      %s28 = ssub.s32 256, 256
      %29 = vsyncadd [#allocation6], %s28
      %s30 = smul.addr %s26, 128
      %s31 = scalar_lea.hbm %s1, %s30
      %s33 = sshll.u32 [#allocation5], 4
      %s34 = int_to_ptr.vmem [resolvable:$true] %s33
      %36 = dma.hbm_to_vmem [thread:$0]  %s31, 256, %s34, [#allocation6]
    $region9: #{tpu_custom_call.1} parent=1 // pred_fallthru
      _
    // Predicated region
    $region10: #{tpu_custom_call.1} parent=1 // pred_check
      _
    $region11: #{tpu_custom_call.1} parent=1 // pred_check_branch
      %38 = sbr.rel (0) target = $region13
    $region12: #{tpu_custom_call.1} parent=1 // pred_region
      %39 = dma.done [#allocation4], 256
    $region13: #{tpu_custom_call.1} parent=1 // pred_fallthru
      _
    // Predicated region
    $region14: #{tpu_custom_call.1} parent=1 // pred_check
      _
    $region15: #{tpu_custom_call.1} parent=1 // pred_check_branch
      %41 = sbr.rel (0) target = $region17
    $region16: #{tpu_custom_call.1} parent=1 // pred_region
      %42 = dma.done [#allocation6], 256
    $region17: #{tpu_custom_call.1} parent=1 // pred_fallthru
      _
    %s43 = sadd.s32 0, 0
    %s44 = smul.u32 2, %s43
    %s45 = sadd.s32 0, 0
    %s46 = smul.u32 2, %s45
    %p47 = scmp.eq.s32.totalorder 0, 0
    // Predicated region
    $region18: #{tpu_custom_call.1} parent=1 // pred_check
      %p48 = pneg %p47
    $region19: #{tpu_custom_call.1} parent=1 // pred_check_branch
      %50 = sbr.rel (%p48) target = $region21
    $region20: #{tpu_custom_call.1} parent=1 // pred_region
      %vm51 = vcmask 7168
      %52 = vst.msk [vmem:[#allocation2] sm:$0xff] %vm51, 0.0
    $region21: #{tpu_custom_call.1} parent=1 // pred_fallthru
      _
    %v53 = vld [vmem:[#allocation2] sm:$0xff]
    %v54 = vld [vmem:[#allocation3] sm:$0xff]
    %v55 = vld [vmem:[#allocation3 + $0x8] sm:$0xff]
    %v56 = vld [vmem:[#allocation5] sm:$0xff]
    %v57 = vld [vmem:[#allocation5 + $0x8] sm:$0xff]
    %v58 = vsub.f32 %v54, %v56
    %v59 = vsub.f32 %v55, %v57
    %v60 = vadd.f32 %v58, %v59
    %61 = vadd.xlane.f32.xlu0 %v60
    %v62 = vpop.xlane.xlu0 %61
    %v63 = vadd.f32 %v62, 0.0
    %v64 = vadd.f32 %v53, %v63
    %vm65 = vcmask 7168
    %66 = vst.msk [vmem:[#allocation2] sm:$0xff] %vm65, %v64
    // Predicated region
    $region22: #{tpu_custom_call.1} parent=1 // pred_check
      %p67 = pneg %p47
    $region23: #{tpu_custom_call.1} parent=1 // pred_check_branch
      %69 = sbr.rel (%p67) target = $region25
    $region24: #{tpu_custom_call.1} parent=1 // pred_region
      %v70 = vld [vmem:[#allocation2] sm:$0xff]
      %v71 = vmul.f32 %v70, 0.00390625
      %72 = vst.msk [vmem:[%s2] sm:$0xff] %vm65, %v71
    $region25: #{tpu_custom_call.1} parent=1 // pred_fallthru
      _
    // Predicated region
    $region26: #{tpu_custom_call.1} parent=1 // pred_check
      _
    $region27: #{tpu_custom_call.1} parent=1 // pred_check_branch
      %74 = sbr.rel (0) target = $region29
    $region28: #{tpu_custom_call.1} parent=1 // pred_region
      _
    $region29: #{tpu_custom_call.1} parent=1 // pred_fallthru
      _
    // Predicated region
    $region30: #{tpu_custom_call.1} parent=1 // pred_check
      _
    $region31: #{tpu_custom_call.1} parent=1 // pred_check_branch
      %76 = sbr.rel (0) target = $region33
    $region32: #{tpu_custom_call.1} parent=1 // pred_region
      _
    $region33: #{tpu_custom_call.1} parent=1 // pred_fallthru
      _
    %77 = vsyncpa [#allocation4], 1
    %78 = vsyncpa [#allocation6], 1

</llo_original>
